<compile_context>
chip_gen: v7x
topology: tpu7x:2x2x1
jax: 0.10.0
libtpu: 0.0.40
codegen_flags: <defaults>
</compile_context>

<pallas_src>
import jax
import jax.numpy as jnp
from jax.experimental import pallas as pl
from jax.experimental.pallas import tpu as pltpu

B = 2             # batch (tasks)
T = 8             # encoder "stream" length (torch dim=2, max-reduced)
X_DIM = 30        # width of x/y coordinate encodings (nn.Linear(30, 64))
X_PAD = 32        # lane-padded coordinate width fed to the kernel
EMB = 64
HID = 192         # 64 (t_out) + 64 (x) + 64 (y)  -> nn.Linear(192, 192)
N_CLASSES = 11
OUT_PAD = 128     # lane-dense padded output width (sliced back to 11 outside)

GRID_H = 8        # output grid queried per task -> one PredictCell call per cell
GRID_W = 8
N_CELLS = GRID_H * GRID_W
CELL_TILE = 32    # cells processed per grid step (multiple of 8)


# ----------------------------------------------------------------------------
# Pallas kernel: everything downstream of the encoder, per (batch, cell-tile).
# ----------------------------------------------------------------------------
def predict_cell_kernel(t_ref, x_ref, y_ref,
                        w1t_ref, wxf_ref, wyf_ref, bf_ref,
                        w2p_ref, b2p_ref, out_ref):
    # t_ref  : (1, 1, EMB)            max-pooled encoder features for batch b
    # x_ref  : (1, CELL_TILE, X_PAD)  coordinate encodings for this cell tile
    # y_ref  : (1, CELL_TILE, X_PAD)
    # out_ref: (1, CELL_TILE, OUT_PAD)
    t_row = t_ref[0]                                                     # (1, EMB)

    # Slice of the first predict Linear that multiplies t_max (64 -> 192).
    h_t = jnp.dot(t_row, w1t_ref[...],
                  preferred_element_type=jnp.float32)                    # (1, HID)

    # x/y embedding Linears + concat + their w1 slices, folded offline into
    # the (32, 192) tables: one MXU push each (replaces the old scalar-driven
    # row-gather + concatenate chain).
    x_blk = x_ref[0]                                                     # (CT, 32)
    y_blk = y_ref[0]
    h = (h_t
         + jnp.dot(x_blk, wxf_ref[...], preferred_element_type=jnp.float32)
         + jnp.dot(y_blk, wyf_ref[...], preferred_element_type=jnp.float32)
         + bf_ref[...])                                                  # (CT, HID)
    h = jnp.maximum(h, 0.0)                                              # ReLU

    # Second predict Linear, zero-padded to 128 lanes -> unmasked store.
    out_ref[0] = (jnp.dot(h, w2p_ref[...], preferred_element_type=jnp.float32)
                  + b2p_ref[...])                                        # (CT, 128)


# ----------------------------------------------------------------------------
# Offline weight fusion (done once, not per call).
# ----------------------------------------------------------------------------
def fuse_params(p):
    w1 = p["w1"]
    w1_x = w1[EMB:2 * EMB, :]            # rows that multiply the x embedding
    w1_y = w1[2 * EMB:3 * EMB, :]        # rows that multiply the y embedding
    wxf = jnp.zeros((X_PAD, HID), jnp.float32).at[:X_DIM, :].set(p["wx"] @ w1_x)
    wyf = jnp.zeros((X_PAD, HID), jnp.float32).at[:X_DIM, :].set(p["wy"] @ w1_y)
    bf = p["bx"] @ w1_x + p["by"] @ w1_y + p["b1"]                       # (1, HID)
    w2p = jnp.zeros((HID, OUT_PAD), jnp.float32).at[:, :N_CLASSES].set(p["w2"])
    b2p = jnp.zeros((1, OUT_PAD), jnp.float32).at[:, :N_CLASSES].set(p["b2"])
    return {"w1t": w1[:EMB, :], "wxf": wxf, "wyf": wyf, "bf": bf,
            "w2p": w2p, "b2p": b2p}


# ----------------------------------------------------------------------------
# Wrapper: layout plumbing + amortized pallas_call over (batch, cell tiles).
# ----------------------------------------------------------------------------
def predict_cell_pallas(t_out, x, y, fp, *, cell_tile=CELL_TILE):
    """t_out: (B, EMB, T) encoder output; x, y: (B, N_CELLS, X_DIM) per-cell
    coordinate encodings.  Returns (B, N_CELLS, N_CLASSES)."""
    b, n_cells = x.shape[0], x.shape[1]
    assert n_cells % cell_tile == 0
    n_tiles = n_cells // cell_tile

    # torch.max(t_out, dim=2).values — wrapper-side (fuses with the other XLA
    # glue ops, 8x less t DMA, no in-kernel cross-sublane reduce).
    t_max = jnp.max(t_out, axis=2).reshape(b, 1, EMB)

    # Lane-pad the 30-wide coordinate encodings to 32; the fused tables carry
    # matching zero rows so the math is unchanged.
    xp = jnp.pad(x, ((0, 0), (0, 0), (0, X_PAD - X_DIM)))
    yp = jnp.pad(y, ((0, 0), (0, 0), (0, X_PAD - X_DIM)))

    # Weight BlockSpecs: full array, constant block index -> VMEM-resident.
    def resident(shape):
        return pl.BlockSpec(shape, lambda i, j: (0,) * len(shape))

    steps = b * n_tiles
    flops = steps * 2 * (EMB * HID
                         + 2 * cell_tile * X_PAD * HID
                         + cell_tile * HID * OUT_PAD)
    bytes_accessed = 4 * (b * EMB + 2 * b * n_cells * X_PAD
                          + b * n_cells * OUT_PAD
                          + EMB * HID + 2 * X_PAD * HID + HID
                          + HID * OUT_PAD + OUT_PAD)

    out = pl.pallas_call(
        predict_cell_kernel,
        out_shape=jax.ShapeDtypeStruct((b, n_cells, OUT_PAD), jnp.float32),
        grid_spec=pltpu.PrefetchScalarGridSpec(
            num_scalar_prefetch=0,
            grid=(b, n_tiles),
            in_specs=[
                pl.BlockSpec((1, 1, EMB), lambda i, j: (i, 0, 0)),
                pl.BlockSpec((1, cell_tile, X_PAD), lambda i, j: (i, j, 0)),
                pl.BlockSpec((1, cell_tile, X_PAD), lambda i, j: (i, j, 0)),
                resident((EMB, HID)),        # w1t
                resident((X_PAD, HID)),      # wxf
                resident((X_PAD, HID)),      # wyf
                resident((1, HID)),          # bf
                resident((HID, OUT_PAD)),    # w2p
                resident((1, OUT_PAD)),      # b2p
            ],
            out_specs=pl.BlockSpec((1, cell_tile, OUT_PAD),
                                   lambda i, j: (i, j, 0)),
        ),
        compiler_params=pltpu.CompilerParams(
            dimension_semantics=("parallel", "parallel")),
        cost_estimate=pl.CostEstimate(flops=flops, transcendentals=0,
                                      bytes_accessed=bytes_accessed),
    )(t_max, xp, yp,
      fp["w1t"], fp["wxf"], fp["wyf"], fp["bf"], fp["w2p"], fp["b2p"])

    return out[:, :, :N_CLASSES]


# ----------------------------------------------------------------------------
# Encoder stand-in (plain-JAX glue).
# TODO(synk): LARCEncoder's definition is not provided in the reference file; this is a
# deterministic stand-in producing the (B, 64, T) tensor the downstream kernel consumes.
# ----------------------------------------------------------------------------
def stub_larc_encoder(enc_w, io_grids, test_in, desc_tokens):
    b = io_grids.shape[0]
    feats = jnp.concatenate(
        [io_grids.reshape(b, -1),
         test_in.reshape(b, -1),
         desc_tokens.astype(jnp.float32)], axis=1)
    t = jnp.tanh(feats @ enc_w)                 # (B, 64*T)
    return t.reshape(b, EMB, T)                 # (B, 64, T)


# ----------------------------------------------------------------------------
# Deterministic parameter init (synthetic weights, not a checkpoint).
# Weights stored (in_features, out_features): x @ W + b == torch x @ W.T + b.
# ----------------------------------------------------------------------------
def init_params(key, feat_dim):
    ks = jax.random.split(key, 8)
    s = 0.05
    return {
        "enc_w": jax.random.normal(ks[0], (feat_dim, EMB * T), jnp.float32) * s,
        "wx": jax.random.normal(ks[1], (X_DIM, EMB), jnp.float32) * s,
        "bx": jax.random.normal(ks[2], (1, EMB), jnp.float32) * s,
        "wy": jax.random.normal(ks[3], (X_DIM, EMB), jnp.float32) * s,
        "by": jax.random.normal(ks[4], (1, EMB), jnp.float32) * s,
        "w1": jax.random.normal(ks[5], (HID, HID), jnp.float32) * s,
        "b1": jax.random.normal(ks[6], (1, HID), jnp.float32) * s,
        "w2": jax.random.normal(ks[7], (HID, N_CLASSES), jnp.float32) * s,
        "b2": jnp.zeros((1, N_CLASSES), jnp.float32),
    }


def reference_forward(t_out, x, y, p):
    """Pure-jnp reference mirroring the PyTorch forward (per cell)."""
    xe = x @ p["wx"] + p["bx"]                                 # (B, N, 64)
    ye = y @ p["wy"] + p["by"]
    t_max = jnp.max(t_out, axis=2)                             # (B, 64)
    t_rep = jnp.broadcast_to(t_max[:, None, :], xe.shape)      # (B, N, 64)
    cls_in = jnp.concatenate([t_rep, xe, ye], axis=-1)         # (B, N, 192)
    h = jnp.maximum(cls_in @ p["w1"] + p["b1"], 0.0)
    return h @ p["w2"] + p["b2"]
    # NOTE: self.softmax is defined in __init__ but never applied in forward().


if __name__ == "__main__":
    key = jax.random.PRNGKey(0)
    k_io, k_test, k_tok, k_p = jax.random.split(key, 4)

    # Small synthetic encoder inputs (shapes chosen small; encoder is a stub anyway).
    io_grids = jax.random.normal(k_io, (B, 2, 11, 8, 8), jnp.float32)
    test_in = jax.random.normal(k_test, (B, 11, 8, 8), jnp.float32)
    desc_tokens = jax.random.randint(k_tok, (B, 16), 0, 1000, jnp.int32)

    # One PredictCell query per cell of an 8x8 output grid: 30-wide one-hot
    # coordinate encodings (the nn.Linear(30, 64) inputs), same coordinate grid
    # for every batch element (the usual per-pixel decoding loop).
    ys_idx, xs_idx = jnp.meshgrid(jnp.arange(GRID_H), jnp.arange(GRID_W),
                                  indexing="ij")
    x_oh = jax.nn.one_hot(xs_idx.reshape(-1), X_DIM, dtype=jnp.float32)   # (64, 30)
    y_oh = jax.nn.one_hot(ys_idx.reshape(-1), X_DIM, dtype=jnp.float32)
    x = jnp.broadcast_to(x_oh[None], (B, N_CELLS, X_DIM))
    y = jnp.broadcast_to(y_oh[None], (B, N_CELLS, X_DIM))

    feat_dim = io_grids[0].size + test_in[0].size + desc_tokens.shape[1]
    params = init_params(k_p, feat_dim)
    fused = fuse_params(params)          # one-time algebraic weight fusion

    # Encoder (JAX glue) -> single amortized Pallas kernel over all cells.
    t_out = stub_larc_encoder(params["enc_w"], io_grids, test_in, desc_tokens)
    out = predict_cell_pallas(t_out, x, y, fused)
    out = jax.block_until_ready(out)

    ref = reference_forward(t_out, x, y, params)
    assert out.shape == (B, N_CELLS, N_CLASSES)
    assert jnp.allclose(out, ref, atol=1e-4, rtol=1e-4), "mismatch vs jnp reference"

    print("KERNEL_OK")
</pallas_src>

<mosaic_0001>
module attributes {stable_mosaic.version = 11 : i64} {
  func.func @predict_cell_kernel(%arg0: i32, %arg1: i32, %arg2: memref<1x1x64xf32, #tpu.memory_space<vmem>>, %arg3: memref<1x32x32xf32, #tpu.memory_space<vmem>>, %arg4: memref<1x32x32xf32, #tpu.memory_space<vmem>>, %arg5: memref<64x192xf32, #tpu.memory_space<vmem>>, %arg6: memref<32x192xf32, #tpu.memory_space<vmem>>, %arg7: memref<32x192xf32, #tpu.memory_space<vmem>>, %arg8: memref<1x192xf32, #tpu.memory_space<vmem>>, %arg9: memref<192x128xf32, #tpu.memory_space<vmem>>, %arg10: memref<1x128xf32, #tpu.memory_space<vmem>>, %arg11: memref<1x32x128xf32, #tpu.memory_space<vmem>>) attributes {dimension_semantics = [#tpu.dimension_semantics<parallel>, #tpu.dimension_semantics<parallel>], iteration_bounds = array<i64: 2, 2>, scalar_prefetch = 0 : i64, scratch_operands = 0 : i64, tpu.core_type = #tpu.core_type<tc>, window_params = [{transform_indices = @transform_0, window_bounds = array<i64: 1, 1, 64>}, {transform_indices = @transform_1, window_bounds = array<i64: 1, 32, 32>}, {transform_indices = @transform_2, window_bounds = array<i64: 1, 32, 32>}, {pipeline_mode = #tpu.pipeline_mode<synchronous>, transform_indices = @transform_3, window_bounds = array<i64: 64, 192>}, {pipeline_mode = #tpu.pipeline_mode<synchronous>, transform_indices = @transform_4, window_bounds = array<i64: 32, 192>}, {pipeline_mode = #tpu.pipeline_mode<synchronous>, transform_indices = @transform_5, window_bounds = array<i64: 32, 192>}, {pipeline_mode = #tpu.pipeline_mode<synchronous>, transform_indices = @transform_6, window_bounds = array<i64: 1, 192>}, {pipeline_mode = #tpu.pipeline_mode<synchronous>, transform_indices = @transform_7, window_bounds = array<i64: 192, 128>}, {pipeline_mode = #tpu.pipeline_mode<synchronous>, transform_indices = @transform_8, window_bounds = array<i64: 1, 128>}, {transform_indices = @transform_9, window_bounds = array<i64: 1, 32, 128>}]} {
    %c0 = arith.constant 0 : index
    %c0_0 = arith.constant 0 : index
    %c0_1 = arith.constant 0 : index
    %0 = vector.load %arg2[%c0, %c0_0, %c0_1] : memref<1x1x64xf32, #tpu.memory_space<vmem>>, vector<1x1x64xf32>
    %1 = vector.shape_cast %0 : vector<1x1x64xf32> to vector<1x64xf32>
    %c0_2 = arith.constant 0 : index
    %c0_3 = arith.constant 0 : index
    %2 = vector.load %arg5[%c0_2, %c0_3] : memref<64x192xf32, #tpu.memory_space<vmem>>, vector<64x192xf32>
    %cst = arith.constant dense<0.000000e+00> : vector<1x192xf32>
    %3 = tpu.matmul %1, %2, %cst {dimension_numbers = #tpu.dot_dimension_numbers<[1], [0], [0], [1], [0, 0, 1, 1], [], []>} : vector<1x64xf32>, vector<64x192xf32>, vector<1x192xf32> -> vector<1x192xf32>
    %c0_4 = arith.constant 0 : index
    %c0_5 = arith.constant 0 : index
    %c0_6 = arith.constant 0 : index
    %4 = vector.load %arg3[%c0_4, %c0_5, %c0_6] : memref<1x32x32xf32, #tpu.memory_space<vmem>>, vector<1x32x32xf32>
    %5 = vector.shape_cast %4 : vector<1x32x32xf32> to vector<32x32xf32>
    %c0_7 = arith.constant 0 : index
    %c0_8 = arith.constant 0 : index
    %c0_9 = arith.constant 0 : index
    %6 = vector.load %arg4[%c0_7, %c0_8, %c0_9] : memref<1x32x32xf32, #tpu.memory_space<vmem>>, vector<1x32x32xf32>
    %7 = vector.shape_cast %6 : vector<1x32x32xf32> to vector<32x32xf32>
    %c0_10 = arith.constant 0 : index
    %c0_11 = arith.constant 0 : index
    %8 = vector.load %arg6[%c0_10, %c0_11] : memref<32x192xf32, #tpu.memory_space<vmem>>, vector<32x192xf32>
    %cst_12 = arith.constant dense<0.000000e+00> : vector<32x192xf32>
    %9 = tpu.matmul %5, %8, %cst_12 {dimension_numbers = #tpu.dot_dimension_numbers<[1], [0], [0], [1], [0, 0, 1, 1], [], []>} : vector<32x32xf32>, vector<32x192xf32>, vector<32x192xf32> -> vector<32x192xf32>
    %10 = vector.broadcast %3 : vector<1x192xf32> to vector<32x192xf32>
    %11 = arith.addf %10, %9 : vector<32x192xf32>
    %c0_13 = arith.constant 0 : index
    %c0_14 = arith.constant 0 : index
    %12 = vector.load %arg7[%c0_13, %c0_14] : memref<32x192xf32, #tpu.memory_space<vmem>>, vector<32x192xf32>
    %cst_15 = arith.constant dense<0.000000e+00> : vector<32x192xf32>
    %13 = tpu.matmul %7, %12, %cst_15 {dimension_numbers = #tpu.dot_dimension_numbers<[1], [0], [0], [1], [0, 0, 1, 1], [], []>} : vector<32x32xf32>, vector<32x192xf32>, vector<32x192xf32> -> vector<32x192xf32>
    %14 = arith.addf %11, %13 : vector<32x192xf32>
    %c0_16 = arith.constant 0 : index
    %c0_17 = arith.constant 0 : index
    %15 = vector.load %arg8[%c0_16, %c0_17] : memref<1x192xf32, #tpu.memory_space<vmem>>, vector<1x192xf32>
    %16 = vector.broadcast %15 : vector<1x192xf32> to vector<32x192xf32>
    %17 = arith.addf %14, %16 : vector<32x192xf32>
    %cst_18 = arith.constant 0.000000e+00 : f32
    %18 = vector.broadcast %cst_18 : f32 to vector<32x192xf32>
    %19 = arith.maximumf %17, %18 : vector<32x192xf32>
    %c0_19 = arith.constant 0 : index
    %c0_20 = arith.constant 0 : index
    %20 = vector.load %arg9[%c0_19, %c0_20] : memref<192x128xf32, #tpu.memory_space<vmem>>, vector<192x128xf32>
    %cst_21 = arith.constant dense<0.000000e+00> : vector<32x128xf32>
    %21 = tpu.matmul %19, %20, %cst_21 {dimension_numbers = #tpu.dot_dimension_numbers<[1], [0], [0], [1], [0, 0, 1, 1], [], []>} : vector<32x192xf32>, vector<192x128xf32>, vector<32x128xf32> -> vector<32x128xf32>
    %c0_22 = arith.constant 0 : index
    %c0_23 = arith.constant 0 : index
    %22 = vector.load %arg10[%c0_22, %c0_23] : memref<1x128xf32, #tpu.memory_space<vmem>>, vector<1x128xf32>
    %23 = vector.broadcast %22 : vector<1x128xf32> to vector<32x128xf32>
    %24 = arith.addf %21, %23 : vector<32x128xf32>
    %c0_24 = arith.constant 0 : index
    %c0_25 = arith.constant 0 : index
    %c0_26 = arith.constant 0 : index
    %25 = vector.load %arg11[%c0_24, %c0_25, %c0_26] : memref<1x32x128xf32, #tpu.memory_space<vmem>>, vector<1x32x128xf32>
    %26 = vector.shape_cast %25 : vector<1x32x128xf32> to vector<32x128xf32>
    %27 = vector.shape_cast %24 : vector<32x128xf32> to vector<1x32x128xf32>
    tpu.vector_store %arg11[%c0_24, %c0_25, %c0_26], %27 {strides = array<i32>} : memref<1x32x128xf32, #tpu.memory_space<vmem>>, vector<1x32x128xf32>,
    return
  }
  func.func @transform_0(%arg0: i32, %arg1: i32) -> (i32, i32, i32) {
    %c0_i32 = arith.constant 0 : i32
    %c0_i32_0 = arith.constant 0 : i32
    %c0_i32_1 = arith.constant 0 : i32
    return %arg0, %c0_i32, %c0_i32_0 : i32, i32, i32
  }
  func.func @transform_1(%arg0: i32, %arg1: i32) -> (i32, i32, i32) {
    %c0_i32 = arith.constant 0 : i32
    %c0_i32_0 = arith.constant 0 : i32
    return %arg0, %arg1, %c0_i32 : i32, i32, i32
  }
  func.func @transform_2(%arg0: i32, %arg1: i32) -> (i32, i32, i32) {
    %c0_i32 = arith.constant 0 : i32
    %c0_i32_0 = arith.constant 0 : i32
    return %arg0, %arg1, %c0_i32 : i32, i32, i32
  }
  func.func @transform_3(%arg0: i32, %arg1: i32) -> (i32, i32) {
    %c0_i32 = arith.constant 0 : i32
    %c0_i32_0 = arith.constant 0 : i32
    %c0_i32_1 = arith.constant 0 : i32
    return %c0_i32, %c0_i32_0 : i32, i32
  }
  func.func @transform_4(%arg0: i32, %arg1: i32) -> (i32, i32) {
    %c0_i32 = arith.constant 0 : i32
    %c0_i32_0 = arith.constant 0 : i32
    %c0_i32_1 = arith.constant 0 : i32
    return %c0_i32, %c0_i32_0 : i32, i32
  }
  func.func @transform_5(%arg0: i32, %arg1: i32) -> (i32, i32) {
    %c0_i32 = arith.constant 0 : i32
    %c0_i32_0 = arith.constant 0 : i32
    %c0_i32_1 = arith.constant 0 : i32
    return %c0_i32, %c0_i32_0 : i32, i32
  }
  func.func @transform_6(%arg0: i32, %arg1: i32) -> (i32, i32) {
    %c0_i32 = arith.constant 0 : i32
    %c0_i32_0 = arith.constant 0 : i32
    %c0_i32_1 = arith.constant 0 : i32
    return %c0_i32, %c0_i32_0 : i32, i32
  }
  func.func @transform_7(%arg0: i32, %arg1: i32) -> (i32, i32) {
    %c0_i32 = arith.constant 0 : i32
    %c0_i32_0 = arith.constant 0 : i32
    %c0_i32_1 = arith.constant 0 : i32
    return %c0_i32, %c0_i32_0 : i32, i32
  }
  func.func @transform_8(%arg0: i32, %arg1: i32) -> (i32, i32) {
    %c0_i32 = arith.constant 0 : i32
    %c0_i32_0 = arith.constant 0 : i32
    %c0_i32_1 = arith.constant 0 : i32
    return %c0_i32, %c0_i32_0 : i32, i32
  }
  func.func @transform_9(%arg0: i32, %arg1: i32) -> (i32, i32, i32) {
    %c0_i32 = arith.constant 0 : i32
    %c0_i32_0 = arith.constant 0 : i32
    return %arg0, %arg1, %c0_i32 : i32, i32, i32
  }
}

</mosaic_0001>

<llo_original>
// kernel: tpu_custom_call.1
$region0: #{tpu_custom_call.1}
  #allocation0 [shape = 'u32[]', space=smem, size = 0x4, offset = 0x4, fixed_abs, tag = 'smem constant byte address 0x4 - core index']
  #allocation1 [shape = 'u32[144,128]{1,0:T(1,128)}', space=vmem, size = 0x12000, scoped, tag = 'internal scratch']
  %s0 = inlined_call_operand.vmem [shape: f32[2,1,64], index: 0, kind: input, shape index: {}]
  %s1 = inlined_call_operand.vmem [shape: f32[2,64,32], index: 1, kind: input, shape index: {}]
  %s2 = inlined_call_operand.vmem [shape: f32[2,64,32], index: 2, kind: input, shape index: {}]
  %s3 = inlined_call_operand.vmem [shape: f32[64,192], index: 3, kind: input, shape index: {}]
  %s4 = inlined_call_operand.hbm [shape: f32[32,192], index: 4, kind: input, shape index: {}]
  %s5 = inlined_call_operand.hbm [shape: f32[32,192], index: 5, kind: input, shape index: {}]
  %s6 = inlined_call_operand.vmem [shape: f32[1,192], index: 6, kind: input, shape index: {}]
  %s7 = inlined_call_operand.vmem [shape: f32[192,128], index: 7, kind: input, shape index: {}]
  %s8 = inlined_call_operand.vmem [shape: f32[1,128], index: 8, kind: input, shape index: {}]
  %s9 = inlined_call_operand.hbm [shape: f32[2,64,128], index: 9, kind: output, shape index: {}]
  %s10 = sld [smem:[#allocation0]]
  $region77: #{tpu_custom_call.1} parent=0
    _
  %s12 = ssub.s32 1, %s10
  %s13 = scalar_select 0, %s12, %s10
  $region1: #{tpu_custom_call.1} parent=0
    #allocation2 [shape = 'u8[32768]{0}', space=vmem, size = 0x8000, scoped, tag = 'input window, operand 4, single buffered']
    #allocation3 [shape = 's32[2]{0}', space=sflag, size = 0x8, scoped, tag = 'scoped memory for tpu_custom_call.1']
    #allocation4 [shape = 's32[2]{0}', space=sflag, size = 0x8, scoped, tag = 'scoped memory for tpu_custom_call.1']
    #allocation5 [shape = 'u8[32768]{0}', space=vmem, size = 0x8000, scoped, tag = 'input window, operand 5, single buffered']
    #allocation6 [shape = 's32[1]{0}', space=sflag, size = 0x4, scoped, tag = 'scoped memory for tpu_custom_call.1']
    #allocation7 [shape = 'u8[32768]{0}', space=vmem, size = 0x8000, scoped, tag = 'output window, operand 0']
    %14 = vsyncpa [#allocation3], 0
    %15 = vsyncpa [#allocation6], 0
    %16 = vsyncpa [#allocation4], 0
    %s17 = scalar_lea.sflag [#allocation4], 1
    %18 = vsyncpa %s17, 0
    loop: start=0, step=1, limit=6
    $region2: #{tpu_custom_call.1} parent=1 // loop_pre_header
      _
    $region3: #{tpu_custom_call.1} parent=1 // loop_header
      %s20 = sphi 0, %s24
      %p21 = scmp.ge.s32.totalorder %s20, 6
      %s27 = sphi 0, %s39
      %s28 = sphi 0, %s35
      %s29 = sphi 0, %s27
      %s30 = sphi 0, %s28
      %s31 = sphi 0, %s29
      %s32 = sphi 0, %s30
      %s42 = sphi 0, %s44
      %s45 = sphi 0, %s42
      %s46 = sphi 0, %s45
      %s62 = sphi 0, %s46
      %s70 = sphi 0, %s72
      %s73 = sphi 0, %s70
      %s74 = sphi 0, %s73
      %s90 = sphi 0, %s74
      %s98 = sphi 0, %s100
      %s101 = sphi 0, %s98
      %s102 = sphi 0, %s101
      %s118 = sphi 0, %s102
      %s122 = sphi 0, %s122
      %s124 = sphi 0, %s122
      %s125 = sphi 0, %s124
      %s139 = sphi 0, %s125
      %s143 = sphi 0, %s143
      %s145 = sphi 0, %s143
      %s146 = sphi 0, %s145
      %s160 = sphi 0, %s146
      %s164 = sphi 0, %s164
      %s166 = sphi 0, %s164
      %s167 = sphi 0, %s166
      %s181 = sphi 0, %s167
      %s185 = sphi 0, %s185
      %s187 = sphi 0, %s185
      %s188 = sphi 0, %s187
      %s202 = sphi 0, %s188
      %s206 = sphi 0, %s206
      %s208 = sphi 0, %s206
      %s209 = sphi 0, %s208
      %s223 = sphi 0, %s209
      %s227 = sphi 0, %s227
      %s229 = sphi 0, %s227
      %s230 = sphi 0, %s229
      %s244 = sphi 0, %s230
      %s252 = sphi 0, %s254
      %s255 = sphi 0, %s252
      %s256 = sphi 0, %s255
      %s272 = sphi 0, %s256
    $region4: #{tpu_custom_call.1} parent=1 // loop_header_branch
      %23 = sbr.rel (%p21) target = $region8
    $region5: #{tpu_custom_call.1} parent=1 // loop_body
      %s25 = ssub.s32 %s20, 1
      %s26 = ssub.s32 %s20, 2
      %s33 = sadd.s32 1, %s28
      %p34 = scmp.ge.s32.totalorder %s33, 2
      %s35 = scalar_select %p34, 0, %s33
      %s36 = sadd.s32 1, %s27
      %s37 = scalar_select %p34, %s36, %s27
      %p38 = scmp.ge.s32.totalorder %s37, 2
      %s39 = scalar_select %p38, 0, %s37
      %s40 = ssub.s32 %s27, %s39
      %p41 = scmp.eq.s32.totalorder %s40, 0
      %s43 = sadd.s32 %s42, 1
      %s44 = scalar_select %p41, %s42, %s43
      %p47 = pneg %p41
      %p48 = scmp.eq.s32.totalorder %s20, 3
      %p49 = por %p47, %p48
      %p50 = scmp.ne.s32.totalorder %s42, %s45
      %p51 = scmp.eq.s32.totalorder %s20, 0
      %p52 = por %p50, %p51
      %p53 = scmp.ne.s32.totalorder %s42, %s45
      %p54 = scmp.eq.s32.totalorder %s25, 3
      %p55 = por %p53, %p54
      %p56 = scmp.ne.s32.totalorder %s45, %s46
      %p57 = scmp.eq.s32.totalorder %s25, 0
      %p58 = por %p56, %p57
      %p59 = scmp.ne.s32.totalorder %s45, %s46
      %p60 = scmp.eq.s32.totalorder %s26, 3
      %p61 = por %p59, %p60
      %p63 = scmp.ne.s32.totalorder %s46, %s62
      %p64 = scmp.eq.s32.totalorder %s26, 0
      %p65 = por %p63, %p64
      %s66 = ssub.s32 %s27, %s39
      %s67 = ssub.s32 %s28, %s35
      %s68 = sor.u32 %s66, %s67
      %p69 = scmp.eq.s32.totalorder %s68, 0
      %s71 = sadd.s32 %s70, 1
      %s72 = scalar_select %p69, %s70, %s71
      %p75 = pneg %p69
      %p76 = scmp.eq.s32.totalorder %s20, 3
      %p77 = por %p75, %p76
      %p78 = scmp.ne.s32.totalorder %s70, %s73
      %p79 = scmp.eq.s32.totalorder %s20, 0
      %p80 = por %p78, %p79
      %p81 = scmp.ne.s32.totalorder %s70, %s73
      %p82 = scmp.eq.s32.totalorder %s25, 3
      %p83 = por %p81, %p82
      %p84 = scmp.ne.s32.totalorder %s73, %s74
      %p85 = scmp.eq.s32.totalorder %s25, 0
      %p86 = por %p84, %p85
      %p87 = scmp.ne.s32.totalorder %s73, %s74
      %p88 = scmp.eq.s32.totalorder %s26, 3
      %p89 = por %p87, %p88
      %p91 = scmp.ne.s32.totalorder %s74, %s90
      %p92 = scmp.eq.s32.totalorder %s26, 0
      %p93 = por %p91, %p92
      %s94 = ssub.s32 %s27, %s39
      %s95 = ssub.s32 %s28, %s35
      %s96 = sor.u32 %s94, %s95
      %p97 = scmp.eq.s32.totalorder %s96, 0
      %s99 = sadd.s32 %s98, 1
      %s100 = scalar_select %p97, %s98, %s99
      %p103 = pneg %p97
      %p104 = scmp.eq.s32.totalorder %s20, 3
      %p105 = por %p103, %p104
      %p106 = scmp.ne.s32.totalorder %s98, %s101
      %p107 = scmp.eq.s32.totalorder %s20, 0
      %p108 = por %p106, %p107
      %p109 = scmp.ne.s32.totalorder %s98, %s101
      %p110 = scmp.eq.s32.totalorder %s25, 3
      %p111 = por %p109, %p110
      %p112 = scmp.ne.s32.totalorder %s101, %s102
      %p113 = scmp.eq.s32.totalorder %s25, 0
      %p114 = por %p112, %p113
      %p115 = scmp.ne.s32.totalorder %s101, %s102
      %p116 = scmp.eq.s32.totalorder %s26, 3
      %p117 = por %p115, %p116
      %p119 = scmp.ne.s32.totalorder %s102, %s118
      %p120 = scmp.eq.s32.totalorder %s26, 0
      %p121 = por %p119, %p120
      %s123 = sadd.s32 %s122, 1
      %p126 = scmp.eq.s32.totalorder %s20, 3
      %p127 = scmp.ne.s32.totalorder %s122, %s124
      %p128 = scmp.eq.s32.totalorder %s20, 0
      %p129 = por %p127, %p128
      %p130 = scmp.ne.s32.totalorder %s122, %s124
      %p131 = scmp.eq.s32.totalorder %s25, 3
      %p132 = por %p130, %p131
      %p133 = scmp.ne.s32.totalorder %s124, %s125
      %p134 = scmp.eq.s32.totalorder %s25, 0
      %p135 = por %p133, %p134
      %p136 = scmp.ne.s32.totalorder %s124, %s125
      %p137 = scmp.eq.s32.totalorder %s26, 3
      %p138 = por %p136, %p137
      %p140 = scmp.ne.s32.totalorder %s125, %s139
      %p141 = scmp.eq.s32.totalorder %s26, 0
      %p142 = por %p140, %p141
      %s144 = sadd.s32 %s143, 1
      %p147 = scmp.eq.s32.totalorder %s20, 3
      %p148 = scmp.ne.s32.totalorder %s143, %s145
      %p149 = scmp.eq.s32.totalorder %s20, 0
      %p150 = por %p148, %p149
      %p151 = scmp.ne.s32.totalorder %s143, %s145
      %p152 = scmp.eq.s32.totalorder %s25, 3
      %p153 = por %p151, %p152
      %p154 = scmp.ne.s32.totalorder %s145, %s146
      %p155 = scmp.eq.s32.totalorder %s25, 0
      %p156 = por %p154, %p155
      %p157 = scmp.ne.s32.totalorder %s145, %s146
      %p158 = scmp.eq.s32.totalorder %s26, 3
      %p159 = por %p157, %p158
      %p161 = scmp.ne.s32.totalorder %s146, %s160
      %p162 = scmp.eq.s32.totalorder %s26, 0
      %p163 = por %p161, %p162
      %s165 = sadd.s32 %s164, 1
      %p168 = scmp.eq.s32.totalorder %s20, 3
      %p169 = scmp.ne.s32.totalorder %s164, %s166
      %p170 = scmp.eq.s32.totalorder %s20, 0
      %p171 = por %p169, %p170
      %p172 = scmp.ne.s32.totalorder %s164, %s166
      %p173 = scmp.eq.s32.totalorder %s25, 3
      %p174 = por %p172, %p173
      %p175 = scmp.ne.s32.totalorder %s166, %s167
      %p176 = scmp.eq.s32.totalorder %s25, 0
      %p177 = por %p175, %p176
      %p178 = scmp.ne.s32.totalorder %s166, %s167
      %p179 = scmp.eq.s32.totalorder %s26, 3
      %p180 = por %p178, %p179
      %p182 = scmp.ne.s32.totalorder %s167, %s181
      %p183 = scmp.eq.s32.totalorder %s26, 0
      %p184 = por %p182, %p183
      %s186 = sadd.s32 %s185, 1
      %p189 = scmp.eq.s32.totalorder %s20, 3
      %p190 = scmp.ne.s32.totalorder %s185, %s187
      %p191 = scmp.eq.s32.totalorder %s20, 0
      %p192 = por %p190, %p191
      %p193 = scmp.ne.s32.totalorder %s185, %s187
      %p194 = scmp.eq.s32.totalorder %s25, 3
      %p195 = por %p193, %p194
      %p196 = scmp.ne.s32.totalorder %s187, %s188
      %p197 = scmp.eq.s32.totalorder %s25, 0
      %p198 = por %p196, %p197
      %p199 = scmp.ne.s32.totalorder %s187, %s188
      %p200 = scmp.eq.s32.totalorder %s26, 3
      %p201 = por %p199, %p200
      %p203 = scmp.ne.s32.totalorder %s188, %s202
      %p204 = scmp.eq.s32.totalorder %s26, 0
      %p205 = por %p203, %p204
      %s207 = sadd.s32 %s206, 1
      %p210 = scmp.eq.s32.totalorder %s20, 3
      %p211 = scmp.ne.s32.totalorder %s206, %s208
      %p212 = scmp.eq.s32.totalorder %s20, 0
      %p213 = por %p211, %p212
      %p214 = scmp.ne.s32.totalorder %s206, %s208
      %p215 = scmp.eq.s32.totalorder %s25, 3
      %p216 = por %p214, %p215
      %p217 = scmp.ne.s32.totalorder %s208, %s209
      %p218 = scmp.eq.s32.totalorder %s25, 0
      %p219 = por %p217, %p218
      %p220 = scmp.ne.s32.totalorder %s208, %s209
      %p221 = scmp.eq.s32.totalorder %s26, 3
      %p222 = por %p220, %p221
      %p224 = scmp.ne.s32.totalorder %s209, %s223
      %p225 = scmp.eq.s32.totalorder %s26, 0
      %p226 = por %p224, %p225
      %s228 = sadd.s32 %s227, 1
      %p231 = scmp.eq.s32.totalorder %s20, 3
      %p232 = scmp.ne.s32.totalorder %s227, %s229
      %p233 = scmp.eq.s32.totalorder %s20, 0
      %p234 = por %p232, %p233
      %p235 = scmp.ne.s32.totalorder %s227, %s229
      %p236 = scmp.eq.s32.totalorder %s25, 3
      %p237 = por %p235, %p236
      %p238 = scmp.ne.s32.totalorder %s229, %s230
      %p239 = scmp.eq.s32.totalorder %s25, 0
      %p240 = por %p238, %p239
      %p241 = scmp.ne.s32.totalorder %s229, %s230
      %p242 = scmp.eq.s32.totalorder %s26, 3
      %p243 = por %p241, %p242
      %p245 = scmp.ne.s32.totalorder %s230, %s244
      %p246 = scmp.eq.s32.totalorder %s26, 0
      %p247 = por %p245, %p246
      %s248 = ssub.s32 %s27, %s39
      %s249 = ssub.s32 %s28, %s35
      %s250 = sor.u32 %s248, %s249
      %p251 = scmp.eq.s32.totalorder %s250, 0
      %s253 = sadd.s32 %s252, 1
      %s254 = scalar_select %p251, %s252, %s253
      %p257 = pneg %p251
      %p258 = scmp.eq.s32.totalorder %s20, 3
      %p259 = por %p257, %p258
      %p260 = scmp.ne.s32.totalorder %s252, %s255
      %p261 = scmp.eq.s32.totalorder %s20, 0
      %p262 = por %p260, %p261
      %p263 = scmp.ne.s32.totalorder %s252, %s255
      %p264 = scmp.eq.s32.totalorder %s25, 3
      %p265 = por %p263, %p264
      %p266 = scmp.ne.s32.totalorder %s255, %s256
      %p267 = scmp.eq.s32.totalorder %s25, 0
      %p268 = por %p266, %p267
      %p269 = scmp.ne.s32.totalorder %s255, %s256
      %p270 = scmp.eq.s32.totalorder %s26, 3
      %p271 = por %p269, %p270
      %p273 = scmp.ne.s32.totalorder %s256, %s272
      %p274 = scmp.eq.s32.totalorder %s26, 0
      %p275 = por %p273, %p274
      %p276 = scmp.le.s32.totalorder 1, %s20
      %p277 = scmp.lt.s32.totalorder %s20, 5
      %p278 = pnand %p276, %p277
      %p279 = pneg %p278
      // Predicated region
      $region9: #{tpu_custom_call.1} parent=5 // pred_check
        _
      $region10: #{tpu_custom_call.1} parent=5 // pred_check_branch
        %281 = sbr.rel (%p278) target = $region12
      $region11: #{tpu_custom_call.1} parent=5 // pred_region
        %s282 = ssub.s32 %s20, 1
        // Predicated region
        $region13: #{tpu_custom_call.1} parent=11 // pred_check
          %p283 = pneg %p135
        $region14: #{tpu_custom_call.1} parent=11 // pred_check_branch
          %285 = sbr.rel (%p283) target = $region16
        $region15: #{tpu_custom_call.1} parent=11 // pred_region
          _
        $region16: #{tpu_custom_call.1} parent=11 // pred_fallthru
          _
        // Predicated region
        $region17: #{tpu_custom_call.1} parent=11 // pred_check
          %p286 = pneg %p156
        $region18: #{tpu_custom_call.1} parent=11 // pred_check_branch
          %288 = sbr.rel (%p286) target = $region20
        $region19: #{tpu_custom_call.1} parent=11 // pred_region
          %s290 = ssub.s32 1024, 1024
          %291 = vsyncadd [#allocation3], %s290
          %s292 = sshll.u32 [#allocation2], 4
          %s293 = int_to_ptr.vmem [resolvable:$true] %s292
          %298 = dma.hbm_to_vmem [thread:$0]  %s4, 1024, %s293, [#allocation3], 256, 256, 16
        $region20: #{tpu_custom_call.1} parent=11 // pred_fallthru
          _
        // Predicated region
        $region21: #{tpu_custom_call.1} parent=11 // pred_check
          %p299 = pneg %p177
        $region22: #{tpu_custom_call.1} parent=11 // pred_check_branch
          %301 = sbr.rel (%p299) target = $region24
        $region23: #{tpu_custom_call.1} parent=11 // pred_region
          %s303 = ssub.s32 1024, 1024
          %304 = vsyncadd [#allocation6], %s303
          %s305 = sshll.u32 [#allocation5], 4
          %s306 = int_to_ptr.vmem [resolvable:$true] %s305
          %311 = dma.hbm_to_vmem [thread:$0]  %s5, 1024, %s306, [#allocation6], 256, 256, 16
        $region24: #{tpu_custom_call.1} parent=11 // pred_fallthru
          _
        // Predicated region
        $region25: #{tpu_custom_call.1} parent=11 // pred_check
          %p312 = pneg %p198
        $region26: #{tpu_custom_call.1} parent=11 // pred_check_branch
          %314 = sbr.rel (%p312) target = $region28
        $region27: #{tpu_custom_call.1} parent=11 // pred_region
          _
        $region28: #{tpu_custom_call.1} parent=11 // pred_fallthru
          _
        // Predicated region
        $region29: #{tpu_custom_call.1} parent=11 // pred_check
          %p315 = pneg %p219
        $region30: #{tpu_custom_call.1} parent=11 // pred_check_branch
          %317 = sbr.rel (%p315) target = $region32
        $region31: #{tpu_custom_call.1} parent=11 // pred_region
          _
        $region32: #{tpu_custom_call.1} parent=11 // pred_fallthru
          _
        // Predicated region
        $region33: #{tpu_custom_call.1} parent=11 // pred_check
          %p318 = pneg %p240
        $region34: #{tpu_custom_call.1} parent=11 // pred_check_branch
          %320 = sbr.rel (%p318) target = $region36
        $region35: #{tpu_custom_call.1} parent=11 // pred_region
          _
        $region36: #{tpu_custom_call.1} parent=11 // pred_fallthru
          _
      $region12: #{tpu_custom_call.1} parent=5 // pred_fallthru
        _
      %p321 = scmp.lt.s32.totalorder %s20, 4
      // Predicated region
      $region37: #{tpu_custom_call.1} parent=5 // pred_check
        %p322 = pneg %p321
      $region38: #{tpu_custom_call.1} parent=5 // pred_check_branch
        %324 = sbr.rel (%p322) target = $region40
      $region39: #{tpu_custom_call.1} parent=5 // pred_region
        // Predicated region
        $region41: #{tpu_custom_call.1} parent=39 // pred_check
          %p325 = pneg %p52
        $region42: #{tpu_custom_call.1} parent=39 // pred_check_branch
          %327 = sbr.rel (%p325) target = $region44
        $region43: #{tpu_custom_call.1} parent=39 // pred_region
          %p328 = scmp.lt.s32.totalorder %s27, 1
          %s329 = scalar_select %p328, %s27, 1
          %s330 = scalar_lea.vmem %s0, %s329
        $region44: #{tpu_custom_call.1} parent=39 // pred_fallthru
          _
        // Predicated region
        $region45: #{tpu_custom_call.1} parent=39 // pred_check
          %p331 = pneg %p80
        $region46: #{tpu_custom_call.1} parent=39 // pred_check_branch
          %333 = sbr.rel (%p331) target = $region48
        $region47: #{tpu_custom_call.1} parent=39 // pred_region
          %s334 = smul.u32 4, %s28
          %p335 = scmp.lt.s32.totalorder %s27, 1
          %s336 = scalar_select %p335, %s27, 1
          %p337 = scmp.lt.s32.totalorder %s334, 7
          %s338 = scalar_select %p337, %s334, 7
          %s339 = smul.addr %s336, 8
          %s340 = sadd.s32 %s338, %s339
          %s341 = smul.addr %s340, 8
          %s342 = scalar_lea.vmem %s1, %s341
          %s343 = smul.u32 4, %s28
        $region48: #{tpu_custom_call.1} parent=39 // pred_fallthru
          _
        // Predicated region
        $region49: #{tpu_custom_call.1} parent=39 // pred_check
          %p344 = pneg %p108
        $region50: #{tpu_custom_call.1} parent=39 // pred_check_branch
          %346 = sbr.rel (%p344) target = $region52
        $region51: #{tpu_custom_call.1} parent=39 // pred_region
          %s347 = smul.u32 4, %s28
          %p348 = scmp.lt.s32.totalorder %s27, 1
          %s349 = scalar_select %p348, %s27, 1
          %p350 = scmp.lt.s32.totalorder %s347, 7
          %s351 = scalar_select %p350, %s347, 7
          %s352 = smul.addr %s349, 8
          %s353 = sadd.s32 %s351, %s352
          %s354 = smul.addr %s353, 8
          %s355 = scalar_lea.vmem %s2, %s354
          %s356 = smul.u32 4, %s28
        $region52: #{tpu_custom_call.1} parent=39 // pred_fallthru
          _
      $region40: #{tpu_custom_call.1} parent=5 // pred_fallthru
        _
      %p357 = scmp.le.s32.totalorder 1, %s20
      %p358 = scmp.lt.s32.totalorder %s20, 5
      %p359 = pnand %p357, %p358
      %p360 = pneg %p359
      // Predicated region
      $region53: #{tpu_custom_call.1} parent=5 // pred_check
        _
      $region54: #{tpu_custom_call.1} parent=5 // pred_check_branch
        %362 = sbr.rel (%p359) target = $region56
      $region55: #{tpu_custom_call.1} parent=5 // pred_region
        %s363 = ssub.s32 %s20, 1
        // Predicated region
        $region57: #{tpu_custom_call.1} parent=55 // pred_check
          %p364 = pneg %p156
        $region58: #{tpu_custom_call.1} parent=55 // pred_check_branch
          %366 = sbr.rel (%p364) target = $region60
        $region59: #{tpu_custom_call.1} parent=55 // pred_region
          %367 = dma.done [#allocation3], 1024
        $region60: #{tpu_custom_call.1} parent=55 // pred_fallthru
          _
        // Predicated region
        $region61: #{tpu_custom_call.1} parent=55 // pred_check
          %p368 = pneg %p177
        $region62: #{tpu_custom_call.1} parent=55 // pred_check_branch
          %370 = sbr.rel (%p368) target = $region64
        $region63: #{tpu_custom_call.1} parent=55 // pred_region
          %371 = dma.done [#allocation6], 1024
        $region64: #{tpu_custom_call.1} parent=55 // pred_fallthru
          _
        %p372 = scmp.lt.s32.totalorder %s29, 1
        %s373 = scalar_select %p372, %s29, 1
        %s374 = scalar_lea.vmem %s0, %s373
        %p375 = pneg %p58
        %p376 = pneg %p55
        %s377 = smul.u32 4, %s30
        %p378 = scmp.lt.s32.totalorder %s29, 1
        %s379 = scalar_select %p378, %s29, 1
        %p380 = scmp.lt.s32.totalorder %s377, 7
        %s381 = scalar_select %p380, %s377, 7
        %s382 = smul.addr %s379, 8
        %s383 = sadd.s32 %s381, %s382
        %s384 = smul.addr %s383, 8
        %s385 = scalar_lea.vmem %s1, %s384
        %p386 = pneg %p86
        %p387 = pneg %p83
        %s388 = smul.u32 4, %s30
        %p389 = scmp.lt.s32.totalorder %s29, 1
        %s390 = scalar_select %p389, %s29, 1
        %p391 = scmp.lt.s32.totalorder %s388, 7
        %s392 = scalar_select %p391, %s388, 7
        %s393 = smul.addr %s390, 8
        %s394 = sadd.s32 %s392, %s393
        %s395 = smul.addr %s394, 8
        %s396 = scalar_lea.vmem %s2, %s395
        %p397 = pneg %p114
        %p398 = pneg %p111
        %p399 = pneg %p135
        %p400 = pneg %p132
        %p401 = pneg %p156
        %p402 = pneg %p153
        %p403 = pneg %p177
        %p404 = pneg %p174
        %p405 = pneg %p198
        %p406 = pneg %p195
        %p407 = pneg %p219
        %p408 = pneg %p216
        %p409 = pneg %p240
        %p410 = pneg %p237
        %p411 = pneg %p268
        %p412 = pneg %p265
        %s413 = sand.u32 %s255, 1
        %s414 = scalar_lea.sflag [#allocation4], %s413
        %s415 = sand.u32 %s255, 1
        %s416 = smul.addr %s415, 32
        %s417 = scalar_lea.vmem [#allocation7], %s416
        %p418 = scmp.lt.s32.totalorder %s29, 1
        %s419 = scalar_select %p418, %s29, 1
        %s420 = scalar_lea.vmem %s0, %s419
        %s421 = smul.u32 4, %s30
        %p422 = scmp.lt.s32.totalorder %s29, 1
        %s423 = scalar_select %p422, %s29, 1
        %p424 = scmp.lt.s32.totalorder %s421, 7
        %s425 = scalar_select %p424, %s421, 7
        %s426 = smul.addr %s423, 8
        %s427 = sadd.s32 %s425, %s426
        %s428 = smul.addr %s427, 8
        %s429 = scalar_lea.vmem %s1, %s428
        %s430 = smul.u32 4, %s30
        %s431 = smul.u32 4, %s30
        %p432 = scmp.lt.s32.totalorder %s29, 1
        %s433 = scalar_select %p432, %s29, 1
        %p434 = scmp.lt.s32.totalorder %s431, 7
        %s435 = scalar_select %p434, %s431, 7
        %s436 = smul.addr %s433, 8
        %s437 = sadd.s32 %s435, %s436
        %s438 = smul.addr %s437, 8
        %s439 = scalar_lea.vmem %s2, %s438
        %s440 = smul.u32 4, %s30
        %s441 = smul.u32 4, %s30
        %v442 = vld [vmem:[%s420] sm:$0x1]
        %v443 = vld [vmem:[%s3] sm:$0xff]
        %v444 = vld [vmem:[%s3 + $0x8] sm:$0xff]
        %v445 = vld [vmem:[%s3 + $0x10] sm:$0xff]
        %v446 = vld [vmem:[%s3 + $0x18] sm:$0xff]
        %v447 = vld [vmem:[%s3 + $0x20] sm:$0xff]
        %v448 = vld [vmem:[%s3 + $0x28] sm:$0xff]
        %v449 = vld [vmem:[%s3 + $0x30] sm:$0xff]
        %v450 = vld [vmem:[%s3 + $0x38] sm:$0xff]
        %v451 = vld [vmem:[%s3 + $0x40] sm:$0xff]
        %v452 = vld [vmem:[%s3 + $0x48] sm:$0xff]
        %v453 = vld [vmem:[%s3 + $0x50] sm:$0xff]
        %v454 = vld [vmem:[%s3 + $0x58] sm:$0xff]
        %v455 = vld [vmem:[%s3 + $0x60] sm:$0xff]
        %v456 = vld [vmem:[%s3 + $0x68] sm:$0xff]
        %v457 = vld [vmem:[%s3 + $0x70] sm:$0xff]
        %v458 = vld [vmem:[%s3 + $0x78] sm:$0xff]
        %vm459 = vcmask 523264
        %v461 = vsel %vm459, %v442, 0
        %463 = vmatprep.subr.mxu0 %v444
        %464 = vmatpush1.msra.mxu0 %v443
        %465 = vmatprep.subr.mxu0 %v446
        %466 = vmatpush1.msra.mxu0 %v445
        %467 = vmatprep.subr.mxu0 %v448
        %468 = vmatpush1.msra.mxu0 %v447
        %469 = vmatprep.subr.mxu0 %v450
        %470 = vmatpush1.msra.mxu0 %v449
        %471 = vmatprep.subr.mxu0 %v452
        %472 = vmatpush1.msra.mxu0 %v451
        %473 = vmatprep.subr.mxu0 %v454
        %474 = vmatpush1.msra.mxu0 %v453
        %475 = vmatprep.subr.mxu0 %v456
        %476 = vmatpush1.msra.mxu0 %v455
        %477 = vmatprep.subr.mxu0 %v458
        %478 = vmatpush1.msra.mxu0 %v457
        %479 = vmatprep.subr.mxu0 0.0
        %480 = vmatpush1.msra.mxu0 0.0
        %481 = vmatprep.subr.mxu0 0.0
        %482 = vmatpush1.msra.mxu0 0.0
        %483 = vmatprep.subr.mxu0 0.0
        %484 = vmatpush1.msra.mxu0 0.0
        %485 = vmatprep.subr.mxu0 0.0
        %486 = vmatpush1.msra.mxu0 0.0
        %487 = vmatprep.subr.mxu0 0.0
        %488 = vmatpush1.msra.mxu0 0.0
        %489 = vmatprep.subr.mxu0 0.0
        %490 = vmatpush1.msra.mxu0 0.0
        %491 = vmatprep.subr.mxu0 0.0
        %492 = vmatpush1.msra.mxu0 0.0
        %493 = vmatprep.subr.mxu0 0.0
        %494 = vmatpush1.msra.mxu0 0.0
        %495 = vmatprep.subr.mxu0 0.0
        %496 = vmatpush1.msra.mxu0 0.0
        %497 = vmatprep.subr.mxu0 0.0
        %498 = vmatpush1.msra.mxu0 0.0
        %499 = vmatprep.subr.mxu0 0.0
        %500 = vmatpush1.msra.mxu0 0.0
        %501 = vmatprep.subr.mxu0 0.0
        %502 = vmatpush1.msra.mxu0 0.0
        %503 = vmatprep.subr.mxu0 0.0
        %504 = vmatpush1.msra.mxu0 0.0
        %505 = vmatprep.subr.mxu0 0.0
        %506 = vmatpush1.msra.mxu0 0.0
        %507 = vmatprep.subr.mxu0 0.0
        %508 = vmatpush1.msra.mxu0 0.0
        %509 = vmatprep.subr.mxu0 0.0
        %510 = vmatpush1.msra.mxu0 0.0
        %511 = vmatprep.subr.mxu0 0.0
        %512 = vmatpush1.msra.mxu0 0.0
        %513 = vmatprep.subr.mxu0 0.0
        %514 = vmatpush1.msra.mxu0 0.0
        %515 = vmatprep.subr.mxu0 0.0
        %516 = vmatpush1.msra.mxu0 0.0
        %517 = vmatprep.subr.mxu0 0.0
        %518 = vmatpush1.msra.mxu0 0.0
        %519 = vmatprep.subr.mxu0 0.0
        %520 = vmatpush1.msra.mxu0 0.0
        %521 = vmatprep.subr.mxu0 0.0
        %522 = vmatpush1.msra.mxu0 0.0
        %523 = vmatprep.subr.mxu0 0.0
        %524 = vmatpush1.msra.mxu0 0.0
        %525 = vmatprep.subr.mxu0 0.0
        %526 = vmatpush1.msra.mxu0 0.0
        %527 = vmatprep.mubr.f32.mxu0 0.0
        %528 = vmatmul.mubr.f32.gmra.mrb[0].mxu0 %v461
        %v529 = vpop.f32.mrb[0].mxu0
        %v530 = vadd.f32 0.0, %v529
        %v531 = vpop.f32.mrb[0].mxu0
        %v532 = vadd.f32 0.0, %v531
        %533 = vdwg.mxu0
        %v534 = vld [vmem:[%s429] sm:$0xff]
        %v535 = vld [vmem:[%s429 + $0x8] sm:$0xff]
        %v536 = vld [vmem:[%s429 + $0x10] sm:$0xff]
        %v537 = vld [vmem:[%s429 + $0x18] sm:$0xff]
        %v538 = vld [vmem:[%s439] sm:$0xff]
        %v539 = vld [vmem:[%s439 + $0x8] sm:$0xff]
        %v540 = vld [vmem:[%s439 + $0x10] sm:$0xff]
        %v541 = vld [vmem:[%s439 + $0x18] sm:$0xff]
        %v542 = vld [vmem:[#allocation2] sm:$0xff]
        %v543 = vld [vmem:[#allocation2 + $0x8] sm:$0xff]
        %v544 = vld [vmem:[#allocation2 + $0x10] sm:$0xff]
        %v545 = vld [vmem:[#allocation2 + $0x18] sm:$0xff]
        %v546 = vld [vmem:[#allocation2 + $0x20] sm:$0xff]
        %v547 = vld [vmem:[#allocation2 + $0x28] sm:$0xff]
        %v548 = vld [vmem:[#allocation2 + $0x30] sm:$0xff]
        %v549 = vld [vmem:[#allocation2 + $0x38] sm:$0xff]
        %vm550 = vcmask 261120
        %v552 = vsel %vm550, %v534, 0
        %v555 = vsel %vm550, %v535, 0
        %v558 = vsel %vm550, %v536, 0
        %v561 = vsel %vm550, %v537, 0
        %563 = vmatprep.subr.mxu0 %v543
        %564 = vmatpush1.msra.mxu0 %v542
        %565 = vmatprep.subr.mxu0 %v545
        %566 = vmatpush1.msra.mxu0 %v544
        %567 = vmatprep.subr.mxu0 %v547
        %568 = vmatpush1.msra.mxu0 %v546
        %569 = vmatprep.subr.mxu0 %v549
        %570 = vmatpush1.msra.mxu0 %v548
        %571 = vmatprep.subr.mxu0 0.0
        %572 = vmatpush1.msra.mxu0 0.0
        %573 = vmatprep.subr.mxu0 0.0
        %574 = vmatpush1.msra.mxu0 0.0
        %575 = vmatprep.subr.mxu0 0.0
        %576 = vmatpush1.msra.mxu0 0.0
        %577 = vmatprep.subr.mxu0 0.0
        %578 = vmatpush1.msra.mxu0 0.0
        %579 = vmatprep.subr.mxu0 0.0
        %580 = vmatpush1.msra.mxu0 0.0
        %581 = vmatprep.subr.mxu0 0.0
        %582 = vmatpush1.msra.mxu0 0.0
        %583 = vmatprep.subr.mxu0 0.0
        %584 = vmatpush1.msra.mxu0 0.0
        %585 = vmatprep.subr.mxu0 0.0
        %586 = vmatpush1.msra.mxu0 0.0
        %587 = vmatprep.subr.mxu0 0.0
        %588 = vmatpush1.msra.mxu0 0.0
        %589 = vmatprep.subr.mxu0 0.0
        %590 = vmatpush1.msra.mxu0 0.0
        %591 = vmatprep.subr.mxu0 0.0
        %592 = vmatpush1.msra.mxu0 0.0
        %593 = vmatprep.subr.mxu0 0.0
        %594 = vmatpush1.msra.mxu0 0.0
        %595 = vmatprep.subr.mxu0 0.0
        %596 = vmatpush1.msra.mxu0 0.0
        %597 = vmatprep.subr.mxu0 0.0
        %598 = vmatpush1.msra.mxu0 0.0
        %599 = vmatprep.subr.mxu0 0.0
        %600 = vmatpush1.msra.mxu0 0.0
        %601 = vmatprep.subr.mxu0 0.0
        %602 = vmatpush1.msra.mxu0 0.0
        %603 = vmatprep.subr.mxu0 0.0
        %604 = vmatpush1.msra.mxu0 0.0
        %605 = vmatprep.subr.mxu0 0.0
        %606 = vmatpush1.msra.mxu0 0.0
        %607 = vmatprep.subr.mxu0 0.0
        %608 = vmatpush1.msra.mxu0 0.0
        %609 = vmatprep.subr.mxu0 0.0
        %610 = vmatpush1.msra.mxu0 0.0
        %611 = vmatprep.subr.mxu0 0.0
        %612 = vmatpush1.msra.mxu0 0.0
        %613 = vmatprep.subr.mxu0 0.0
        %614 = vmatpush1.msra.mxu0 0.0
        %615 = vmatprep.subr.mxu0 0.0
        %616 = vmatpush1.msra.mxu0 0.0
        %617 = vmatprep.subr.mxu0 0.0
        %618 = vmatpush1.msra.mxu0 0.0
        %619 = vmatprep.subr.mxu0 0.0
        %620 = vmatpush1.msra.mxu0 0.0
        %621 = vmatprep.subr.mxu0 0.0
        %622 = vmatpush1.msra.mxu0 0.0
        %623 = vmatprep.subr.mxu0 0.0
        %624 = vmatpush1.msra.mxu0 0.0
        %625 = vmatprep.subr.mxu0 0.0
        %626 = vmatpush1.msra.mxu0 0.0
        %627 = vmatprep.mubr.f32.mxu0 0.0
        %628 = vmatmul.mubr.f32.gmra.mrb[0].mxu0 %v552
        %v629 = vpop.f32.mrb[0].mxu0
        %v630 = vadd.f32 0.0, %v629
        %v631 = vpop.f32.mrb[0].mxu0
        %v632 = vadd.f32 0.0, %v631
        %633 = vmatprep.mubr.f32.mxu0 0.0
        %634 = vmatmul.mubr.f32.gmra.mrb[0].mxu0 %v555
        %v635 = vpop.f32.mrb[0].mxu0
        %v636 = vadd.f32 0.0, %v635
        %v637 = vpop.f32.mrb[0].mxu0
        %v638 = vadd.f32 0.0, %v637
        %639 = vmatprep.mubr.f32.mxu0 0.0
        %640 = vmatmul.mubr.f32.gmra.mrb[0].mxu0 %v558
        %v641 = vpop.f32.mrb[0].mxu0
        %v642 = vadd.f32 0.0, %v641
        %v643 = vpop.f32.mrb[0].mxu0
        %v644 = vadd.f32 0.0, %v643
        %645 = vmatprep.mubr.f32.mxu0 0.0
        %646 = vmatmul.mubr.f32.gmra.mrb[0].mxu0 %v561
        %v647 = vpop.f32.mrb[0].mxu0
        %v648 = vadd.f32 0.0, %v647
        %v649 = vpop.f32.mrb[0].mxu0
        %v650 = vadd.f32 0.0, %v649
        %651 = vdwg.mxu0
        %v652 = vlaneseq
        %v653 = vshrl.u32 %v652, 7
        %v654 = vsub.s32 0, %v653
        %v655 = vrot.slane %v530, %v654
        %v656 = vlaneseq
        %v657 = vshrl.u32 %v656, 7
        %v658 = vsub.s32 0, %v657
        %v659 = vrot.slane %v532, %v658
        %v660 = vadd.f32 %v655, %v630
        %v661 = vadd.f32 %v659, %v632
        %v662 = vadd.f32 %v655, %v636
        %v663 = vadd.f32 %v659, %v638
        %v664 = vadd.f32 %v655, %v642
        %v665 = vadd.f32 %v659, %v644
        %v666 = vadd.f32 %v655, %v648
        %v667 = vadd.f32 %v659, %v650
        %v668 = vld [vmem:[#allocation5] sm:$0xff]
        %v669 = vld [vmem:[#allocation5 + $0x8] sm:$0xff]
        %v670 = vld [vmem:[#allocation5 + $0x10] sm:$0xff]
        %v671 = vld [vmem:[#allocation5 + $0x18] sm:$0xff]
        %v672 = vld [vmem:[#allocation5 + $0x20] sm:$0xff]
        %v673 = vld [vmem:[#allocation5 + $0x28] sm:$0xff]
        %v674 = vld [vmem:[#allocation5 + $0x30] sm:$0xff]
        %v675 = vld [vmem:[#allocation5 + $0x38] sm:$0xff]
        %v677 = vsel %vm550, %v538, 0
        %v680 = vsel %vm550, %v539, 0
        %v683 = vsel %vm550, %v540, 0
        %v686 = vsel %vm550, %v541, 0
        %688 = vmatprep.subr.mxu0 %v669
        %689 = vmatpush1.msra.mxu0 %v668
        %690 = vmatprep.subr.mxu0 %v671
        %691 = vmatpush1.msra.mxu0 %v670
        %692 = vmatprep.subr.mxu0 %v673
        %693 = vmatpush1.msra.mxu0 %v672
        %694 = vmatprep.subr.mxu0 %v675
        %695 = vmatpush1.msra.mxu0 %v674
        %696 = vmatprep.subr.mxu0 0.0
        %697 = vmatpush1.msra.mxu0 0.0
        %698 = vmatprep.subr.mxu0 0.0
        %699 = vmatpush1.msra.mxu0 0.0
        %700 = vmatprep.subr.mxu0 0.0
        %701 = vmatpush1.msra.mxu0 0.0
        %702 = vmatprep.subr.mxu0 0.0
        %703 = vmatpush1.msra.mxu0 0.0
        %704 = vmatprep.subr.mxu0 0.0
        %705 = vmatpush1.msra.mxu0 0.0
        %706 = vmatprep.subr.mxu0 0.0
        %707 = vmatpush1.msra.mxu0 0.0
        %708 = vmatprep.subr.mxu0 0.0
        %709 = vmatpush1.msra.mxu0 0.0
        %710 = vmatprep.subr.mxu0 0.0
        %711 = vmatpush1.msra.mxu0 0.0
        %712 = vmatprep.subr.mxu0 0.0
        %713 = vmatpush1.msra.mxu0 0.0
        %714 = vmatprep.subr.mxu0 0.0
        %715 = vmatpush1.msra.mxu0 0.0
        %716 = vmatprep.subr.mxu0 0.0
        %717 = vmatpush1.msra.mxu0 0.0
        %718 = vmatprep.subr.mxu0 0.0
        %719 = vmatpush1.msra.mxu0 0.0
        %720 = vmatprep.subr.mxu0 0.0
        %721 = vmatpush1.msra.mxu0 0.0
        %722 = vmatprep.subr.mxu0 0.0
        %723 = vmatpush1.msra.mxu0 0.0
        %724 = vmatprep.subr.mxu0 0.0
        %725 = vmatpush1.msra.mxu0 0.0
        %726 = vmatprep.subr.mxu0 0.0
        %727 = vmatpush1.msra.mxu0 0.0
        %728 = vmatprep.subr.mxu0 0.0
        %729 = vmatpush1.msra.mxu0 0.0
        %730 = vmatprep.subr.mxu0 0.0
        %731 = vmatpush1.msra.mxu0 0.0
        %732 = vmatprep.subr.mxu0 0.0
        %733 = vmatpush1.msra.mxu0 0.0
        %734 = vmatprep.subr.mxu0 0.0
        %735 = vmatpush1.msra.mxu0 0.0
        %736 = vmatprep.subr.mxu0 0.0
        %737 = vmatpush1.msra.mxu0 0.0
        %738 = vmatprep.subr.mxu0 0.0
        %739 = vmatpush1.msra.mxu0 0.0
        %740 = vmatprep.subr.mxu0 0.0
        %741 = vmatpush1.msra.mxu0 0.0
        %742 = vmatprep.subr.mxu0 0.0
        %743 = vmatpush1.msra.mxu0 0.0
        %744 = vmatprep.subr.mxu0 0.0
        %745 = vmatpush1.msra.mxu0 0.0
        %746 = vmatprep.subr.mxu0 0.0
        %747 = vmatpush1.msra.mxu0 0.0
        %748 = vmatprep.subr.mxu0 0.0
        %749 = vmatpush1.msra.mxu0 0.0
        %750 = vmatprep.subr.mxu0 0.0
        %751 = vmatpush1.msra.mxu0 0.0
        %752 = vmatprep.mubr.f32.mxu0 0.0
        %753 = vmatmul.mubr.f32.gmra.mrb[0].mxu0 %v677
        %v754 = vpop.f32.mrb[0].mxu0
        %v755 = vadd.f32 0.0, %v754
        %v756 = vpop.f32.mrb[0].mxu0
        %v757 = vadd.f32 0.0, %v756
        %758 = vmatprep.mubr.f32.mxu0 0.0
        %759 = vmatmul.mubr.f32.gmra.mrb[0].mxu0 %v680
        %v760 = vpop.f32.mrb[0].mxu0
        %v761 = vadd.f32 0.0, %v760
        %v762 = vpop.f32.mrb[0].mxu0
        %v763 = vadd.f32 0.0, %v762
        %764 = vmatprep.mubr.f32.mxu0 0.0
        %765 = vmatmul.mubr.f32.gmra.mrb[0].mxu0 %v683
        %v766 = vpop.f32.mrb[0].mxu0
        %v767 = vadd.f32 0.0, %v766
        %v768 = vpop.f32.mrb[0].mxu0
        %v769 = vadd.f32 0.0, %v768
        %770 = vmatprep.mubr.f32.mxu0 0.0
        %771 = vmatmul.mubr.f32.gmra.mrb[0].mxu0 %v686
        %v772 = vpop.f32.mrb[0].mxu0
        %v773 = vadd.f32 0.0, %v772
        %v774 = vpop.f32.mrb[0].mxu0
        %v775 = vadd.f32 0.0, %v774
        %776 = vdwg.mxu0
        %v777 = vadd.f32 %v660, %v755
        %v778 = vadd.f32 %v661, %v757
        %v779 = vadd.f32 %v662, %v761
        %v780 = vadd.f32 %v663, %v763
        %v781 = vadd.f32 %v664, %v767
        %v782 = vadd.f32 %v665, %v769
        %v783 = vadd.f32 %v666, %v773
        %v784 = vadd.f32 %v667, %v775
        %v785 = vld [vmem:[%s6] sm:$0x3]
        %v787 = vlaneseq
        %v788 = vshrl.u32 %v787, 7
        %v789 = vsub.s32 0, %v788
        %v790 = vrot.slane %v785, %v789
        %v791 = vlaneseq
        %v792 = vshrl.u32 %v791, 7
        %v793 = vsub.s32 1, %v792
        %v794 = vrot.slane %v785, %v793
        %v797 = vadd.f32 %v777, %v790
        %v798 = vadd.f32 %v778, %v794
        %v799 = vadd.f32 %v779, %v790
        %v800 = vadd.f32 %v780, %v794
        %v801 = vadd.f32 %v781, %v790
        %v802 = vadd.f32 %v782, %v794
        %v803 = vadd.f32 %v783, %v790
        %v804 = vadd.f32 %v784, %v794
        %v805 = vmax.f32 %v797, 0.0
        %v806 = vmax.f32 %v798, 0.0
        %v807 = vmax.f32 %v799, 0.0
        %v808 = vmax.f32 %v800, 0.0
        %v809 = vmax.f32 %v801, 0.0
        %v810 = vmax.f32 %v802, 0.0
        %v811 = vmax.f32 %v803, 0.0
        %v812 = vmax.f32 %v804, 0.0
        %v813 = vld [vmem:[%s7] sm:$0xff]
        %v814 = vld [vmem:[%s7 + $0x8] sm:$0xff]
        %v815 = vld [vmem:[%s7 + $0x10] sm:$0xff]
        %v816 = vld [vmem:[%s7 + $0x18] sm:$0xff]
        %v817 = vld [vmem:[%s7 + $0x20] sm:$0xff]
        %v818 = vld [vmem:[%s7 + $0x28] sm:$0xff]
        %v819 = vld [vmem:[%s7 + $0x30] sm:$0xff]
        %v820 = vld [vmem:[%s7 + $0x38] sm:$0xff]
        %v821 = vld [vmem:[%s7 + $0x40] sm:$0xff]
        %v822 = vld [vmem:[%s7 + $0x48] sm:$0xff]
        %v823 = vld [vmem:[%s7 + $0x50] sm:$0xff]
        %v824 = vld [vmem:[%s7 + $0x58] sm:$0xff]
        %v825 = vld [vmem:[%s7 + $0x60] sm:$0xff]
        %v826 = vld [vmem:[%s7 + $0x68] sm:$0xff]
        %v827 = vld [vmem:[%s7 + $0x70] sm:$0xff]
        %v828 = vld [vmem:[%s7 + $0x78] sm:$0xff]
        %v829 = vld [vmem:[%s7 + $0x80] sm:$0xff]
        %v830 = vld [vmem:[%s7 + $0x88] sm:$0xff]
        %v831 = vld [vmem:[%s7 + $0x90] sm:$0xff]
        %v832 = vld [vmem:[%s7 + $0x98] sm:$0xff]
        %v833 = vld [vmem:[%s7 + $0xa0] sm:$0xff]
        %v834 = vld [vmem:[%s7 + $0xa8] sm:$0xff]
        %v835 = vld [vmem:[%s7 + $0xb0] sm:$0xff]
        %v836 = vld [vmem:[%s7 + $0xb8] sm:$0xff]
        %v837 = vld [vmem:[%s8] sm:$0x1]
        %v839 = vlaneseq
        %v840 = vshrl.u32 %v839, 7
        %v841 = vsub.s32 0, %v840
        %v842 = vrot.slane %v837, %v841
        %v845 = vsel %vm459, %v806, 0
        %v848 = vsel %vm459, %v808, 0
        %v851 = vsel %vm459, %v810, 0
        %v854 = vsel %vm459, %v812, 0
        %856 = vmatprep.subr.mxu0 0.0
        %857 = vmatpush1.msra.mxu0 %v813
        %858 = vmatprep.subr.mxu0 0.0
        %859 = vmatpush1.msra.mxu0 %v814
        %860 = vmatprep.subr.mxu0 0.0
        %861 = vmatpush1.msra.mxu0 %v815
        %862 = vmatprep.subr.mxu0 0.0
        %863 = vmatpush1.msra.mxu0 %v816
        %864 = vmatprep.subr.mxu0 0.0
        %865 = vmatpush1.msra.mxu0 %v817
        %866 = vmatprep.subr.mxu0 0.0
        %867 = vmatpush1.msra.mxu0 %v818
        %868 = vmatprep.subr.mxu0 0.0
        %869 = vmatpush1.msra.mxu0 %v819
        %870 = vmatprep.subr.mxu0 0.0
        %871 = vmatpush1.msra.mxu0 %v820
        %872 = vmatprep.subr.mxu0 0.0
        %873 = vmatpush1.msra.mxu0 %v821
        %874 = vmatprep.subr.mxu0 0.0
        %875 = vmatpush1.msra.mxu0 %v822
        %876 = vmatprep.subr.mxu0 0.0
        %877 = vmatpush1.msra.mxu0 %v823
        %878 = vmatprep.subr.mxu0 0.0
        %879 = vmatpush1.msra.mxu0 %v824
        %880 = vmatprep.subr.mxu0 0.0
        %881 = vmatpush1.msra.mxu0 %v825
        %882 = vmatprep.subr.mxu0 0.0
        %883 = vmatpush1.msra.mxu0 %v826
        %884 = vmatprep.subr.mxu0 0.0
        %885 = vmatpush1.msra.mxu0 %v827
        %886 = vmatprep.subr.mxu0 0.0
        %887 = vmatpush1.msra.mxu0 %v828
        %888 = vmatprep.subr.mxu0 0.0
        %889 = vmatpush1.msra.mxu0 %v829
        %890 = vmatprep.subr.mxu0 0.0
        %891 = vmatpush1.msra.mxu0 %v830
        %892 = vmatprep.subr.mxu0 0.0
        %893 = vmatpush1.msra.mxu0 %v831
        %894 = vmatprep.subr.mxu0 0.0
        %895 = vmatpush1.msra.mxu0 %v832
        %896 = vmatprep.subr.mxu0 0.0
        %897 = vmatpush1.msra.mxu0 %v833
        %898 = vmatprep.subr.mxu0 0.0
        %899 = vmatpush1.msra.mxu0 %v834
        %900 = vmatprep.subr.mxu0 0.0
        %901 = vmatpush1.msra.mxu0 %v835
        %902 = vmatprep.subr.mxu0 0.0
        %903 = vmatpush1.msra.mxu0 %v836
        %904 = vmatprep.subr.mxu0 0.0
        %905 = vmatpush1.msra.mxu0 0.0
        %906 = vmatprep.subr.mxu0 0.0
        %907 = vmatpush1.msra.mxu0 0.0
        %908 = vmatprep.subr.mxu0 0.0
        %909 = vmatpush1.msra.mxu0 0.0
        %910 = vmatprep.subr.mxu0 0.0
        %911 = vmatpush1.msra.mxu0 0.0
        %912 = vmatprep.subr.mxu0 0.0
        %913 = vmatpush1.msra.mxu0 0.0
        %914 = vmatprep.subr.mxu0 0.0
        %915 = vmatpush1.msra.mxu0 0.0
        %916 = vmatprep.subr.mxu0 0.0
        %917 = vmatpush1.msra.mxu0 0.0
        %918 = vmatprep.subr.mxu0 0.0
        %919 = vmatpush1.msra.mxu0 0.0
        %920 = vmatprep.mubr.f32.mxu0 %v845
        %921 = vmatmul.mubr.f32.gmra.mrb[0].mxu0 %v805
        %v922 = vpop.f32.mrb[0].mxu0
        %v923 = vadd.f32 %v842, %v922
        %v924 = vpop.f32.mrb[0].mxu0
        %925 = vmatprep.mubr.f32.mxu0 %v848
        %926 = vmatmul.mubr.f32.gmra.mrb[0].mxu0 %v807
        %v927 = vpop.f32.mrb[0].mxu0
        %v928 = vadd.f32 %v842, %v927
        %v929 = vpop.f32.mrb[0].mxu0
        %930 = vmatprep.mubr.f32.mxu0 %v851
        %931 = vmatmul.mubr.f32.gmra.mrb[0].mxu0 %v809
        %v932 = vpop.f32.mrb[0].mxu0
        %v933 = vadd.f32 %v842, %v932
        %v934 = vpop.f32.mrb[0].mxu0
        %935 = vmatprep.mubr.f32.mxu0 %v854
        %936 = vmatmul.mubr.f32.gmra.mrb[0].mxu0 %v811
        %v937 = vpop.f32.mrb[0].mxu0
        %v938 = vadd.f32 %v842, %v937
        %v939 = vpop.f32.mrb[0].mxu0
        %940 = vdwg.mxu0
        %941 = vst [vmem:[%s417] sm:$0xff] %v923
        %942 = vst [vmem:[%s417 + $0x8] sm:$0xff] %v928
        %943 = vst [vmem:[%s417 + $0x10] sm:$0xff] %v933
        %944 = vst [vmem:[%s417 + $0x18] sm:$0xff] %v938
        %s945 = sand.u32 %s255, 1
        %s946 = scalar_lea.sflag [#allocation4], %s945
        %s947 = sand.u32 %s255, 1
        %s948 = smul.addr %s947, 32
        %s949 = scalar_lea.vmem [#allocation7], %s948
        // Predicated region
        $region65: #{tpu_custom_call.1} parent=55 // pred_check
          %p950 = pneg %p265
        $region66: #{tpu_custom_call.1} parent=55 // pred_check_branch
          %952 = sbr.rel (%p950) target = $region68
        $region67: #{tpu_custom_call.1} parent=55 // pred_region
          %s953 = smul.u32 4, %s30
          %s955 = ssub.s32 512, 512
          %956 = vsyncadd %s946, %s955
          %s957 = smul.addr %s29, 8
          %s958 = sadd.s32 %s953, %s957
          %s959 = smul.addr %s958, 128
          %s960 = scalar_lea.hbm %s9, %s959
          %s961 = sshll.u32 %s949, 4
          %s962 = int_to_ptr.vmem [resolvable:$true] %s961
          %967 = dma.vmem_to_hbm [thread:$0]  %s962, 512, %s960, %s946, 128, 128, 8
        $region68: #{tpu_custom_call.1} parent=55 // pred_fallthru
          _
      $region56: #{tpu_custom_call.1} parent=5 // pred_fallthru
        _
      %p968 = scmp.le.s32.totalorder 2, %s20
      // Predicated region
      $region69: #{tpu_custom_call.1} parent=5 // pred_check
        %p969 = pneg %p968
      $region70: #{tpu_custom_call.1} parent=5 // pred_check_branch
        %971 = sbr.rel (%p969) target = $region72
      $region71: #{tpu_custom_call.1} parent=5 // pred_region
        %s972 = ssub.s32 %s20, 2
        // Predicated region
        $region73: #{tpu_custom_call.1} parent=71 // pred_check
          %p973 = pneg %p271
        $region74: #{tpu_custom_call.1} parent=71 // pred_check_branch
          %975 = sbr.rel (%p973) target = $region76
        $region75: #{tpu_custom_call.1} parent=71 // pred_region
          %s976 = sand.u32 %s256, 1
          %s977 = scalar_lea.sflag [#allocation4], %s976
          %s978 = sand.u32 %s256, 1
          %s979 = smul.addr %s978, 32
          %s980 = scalar_lea.vmem [#allocation7], %s979
          %981 = dma.done %s977, 512
        $region76: #{tpu_custom_call.1} parent=71 // pred_fallthru
          _
      $region72: #{tpu_custom_call.1} parent=5 // pred_fallthru
        _
    $region6: #{tpu_custom_call.1} parent=1 // loop_footer
      %s24 = sadd.s32 1, %s20
    $region7: #{tpu_custom_call.1} parent=1 // loop_footer_branch
      %19 = sbr.rel target = $region3
    $region8: #{tpu_custom_call.1} parent=1 // loop_exit
      _
    %982 = vsyncpa [#allocation3], 1
    %s983 = scalar_lea.sflag [#allocation3], 1
    %984 = vsyncpa %s983, 1
    %985 = vsyncpa [#allocation6], 1
    %986 = vsyncpa [#allocation4], 1
    %s987 = scalar_lea.sflag [#allocation4], 1
    %988 = vsyncpa %s987, 1

</llo_original>
